<compile_context>
chip_gen: v5e
topology: v5e:2x2
jax: 0.10.0
libtpu: 0.0.40
codegen_flags: <defaults>
</compile_context>

<pallas_src>
import jax
import jax.numpy as jnp
from jax import lax
from jax.experimental import pallas as pl
from jax.experimental.pallas import tpu as pltpu


def _fused_logsoftmax_kernel(x_ref, w_ref, b_ref, o_ref, m_sc, l_sc):
    """Grid (nb, nv). o_ref is the full (tb, Vp) strip for batch tile i, kept
    resident in VMEM across the vocab ('arbitrary') axis."""
    j = pl.program_id(1)
    tv = w_ref.shape[0]

    @pl.when(j == 0)
    def _():
        m_sc[...] = jnp.full_like(m_sc[...], -jnp.inf)
        l_sc[...] = jnp.zeros_like(l_sc[...])

    # MXU: (tb, E) x (tv, E) contracted over E (weight in native (V, E) layout,
    # bf16 operands, f32 accumulation), plus bias.
    logits = lax.dot_general(
        x_ref[...], w_ref[...],
        dimension_numbers=(((1,), (1,)), ((), ())),
        preferred_element_type=jnp.float32,
    ) + b_ref[...]

    # Stash raw logits into the resident output strip (lane-aligned slice).
    col = pl.multiple_of(j * tv, 128)
    o_ref[:, pl.ds(col, tv)] = logits

    # Online (flash-style) max / sum(exp) accumulation across vocab tiles.
    m_prev = m_sc[...]
    m_new = jnp.maximum(m_prev, jnp.max(logits, axis=-1, keepdims=True))
    l_sc[...] = (l_sc[...] * jnp.exp(m_prev - m_new)
                 + jnp.sum(jnp.exp(logits - m_new), axis=-1, keepdims=True))
    m_sc[...] = m_new

    @pl.when(j == pl.num_programs(1) - 1)
    def _():
        lse = m_sc[...] + jnp.log(l_sc[...])
        o_ref[...] = o_ref[...] - lse          # (tb, 1) broadcast over (tb, Vp)


def _tpu_limits():
    """(physical VMEM bytes per core, #TensorCores) with conservative fallbacks."""
    vmem_phys = 64 * 1024 * 1024   # v7x floor; v5e/v6e actually have 128 MiB
    cores = 1
    try:
        info = pltpu.get_tpu_info()
        vmem_phys = int(getattr(info, "vmem_capacity_bytes", vmem_phys))
        for name in ("num_tensorcores", "tensorcore_count", "num_cores", "core_count"):
            v = getattr(info, name, None)
            if v is not None:
                cores = max(cores, int(v))
                break
    except Exception:
        pass
    return vmem_phys, cores


def skipgram_forward(input_word, embedding_table, linear_w, linear_b,
                     *, block_b=128, block_v=2048):
    """input_word: (B,) int; embedding_table: (V, E); linear_w: (V, E) (nn.Linear
    (out, in) layout); linear_b: (V,). Returns (B, V) f32 log-probs."""
    B = input_word.shape[0]
    V, E = embedding_table.shape
    assert linear_w.shape == (V, E) and linear_b.shape == (V,)

    def rup(x, m):
        return (x + m - 1) // m * m

    vmem_phys, n_cores = _tpu_limits()
    vmem_cap = max(32 * 1024 * 1024, vmem_phys - 8 * 1024 * 1024)  # 56 MiB on v7x, 120 MiB v5e/v6e

    tb = min(block_b, rup(B, 8))
    tv = min(block_v, rup(V, 128))

    # v7x megacore: make sure the "parallel" batch axis has >= 2 grid steps so
    # both TensorCores get work (no-op on single-core v5e/v6e).
    if n_cores >= 2 and B > 8 and rup(B, tb) // tb < 2:
        tb = max(8, rup(pl.cdiv(B, 2), 8))

    def vmem_bytes(tb_, tv_):
        vp_ = rup(V, tv_)
        return (2 * tb_ * vp_ * 4        # resident output strip, double-buffered
                + 2 * tb_ * E * 2        # x tiles (bf16)
                + 2 * tv_ * E * 2        # weight tiles (bf16)
                + 2 * tv_ * 4            # bias tiles
                + 2 * tb_ * 4 * 2)       # m / l scratch

    # Shrink the batch tile until the resident (tb, Vp) strip fits the budget.
    while tb > 8 and vmem_bytes(tb, tv) > vmem_cap:
        tb = max(8, rup(tb // 2, 8))
    # TODO(synk): for vocabularies so large that even a (8, Vp) f32 strip blows
    # VMEM, switch to a recompute-second-sweep variant (grid (nb, 2, nv)).

    Bp, Vp = rup(B, tb), rup(V, tv)
    nb, nv = Bp // tb, Vp // tv

    # Embedding gather (plain JAX glue).
    # TODO(synk): fuse the gather into the kernel (scalar-prefetch input_word +
    # per-row DMA gather) to drop the (Bp, E) HBM materialize and one launch.
    idx = input_word.astype(jnp.int32)
    if Bp != B:
        idx = jnp.pad(idx, (0, Bp - B))
    x = jnp.take(embedding_table, idx, axis=0).astype(jnp.bfloat16)    # (Bp, E)

    # bf16 MXU operands; bias stays f32. Padded vocab columns: zero weight rows
    # plus a very negative bias so they never affect max / sum(exp).
    w = linear_w.astype(jnp.bfloat16)
    b = linear_b.astype(jnp.float32).reshape(1, V)
    if Vp != V:
        w = jnp.pad(w, ((0, Vp - V), (0, 0)))
        b = jnp.pad(b, ((0, 0), (0, Vp - V)), constant_values=-1e30)

    vmem_limit = int(min(vmem_cap,
                         max(32 * 1024 * 1024, (5 * vmem_bytes(tb, tv)) // 4)))

    cost = pl.CostEstimate(
        flops=2 * Bp * E * Vp,
        transcendentals=Bp * Vp,
        bytes_accessed=(Bp * E * 2                    # x read
                        + nb * (Vp * E * 2 + Vp * 4)  # weight + bias per batch tile
                        + Bp * Vp * 4),               # log-probs written once
    )

    out = pl.pallas_call(
        _fused_logsoftmax_kernel,
        out_shape=jax.ShapeDtypeStruct((Bp, Vp), jnp.float32),
        grid_spec=pltpu.PrefetchScalarGridSpec(
            num_scalar_prefetch=0,
            grid=(nb, nv),
            in_specs=[
                pl.BlockSpec((tb, E), lambda i, j: (i, 0)),   # embeddings
                pl.BlockSpec((tv, E), lambda i, j: (j, 0)),   # weight (V, E) tile
                pl.BlockSpec((1, tv), lambda i, j: (0, j)),   # bias tile
            ],
            out_specs=pl.BlockSpec((tb, Vp), lambda i, j: (i, 0)),  # resident strip
            scratch_shapes=[pltpu.VMEM((tb, 1), jnp.float32),   # running max
                            pltpu.VMEM((tb, 1), jnp.float32)],  # running sum(exp)
        ),
        compiler_params=pltpu.CompilerParams(
            dimension_semantics=("parallel", "arbitrary"),
            vmem_limit_bytes=vmem_limit,
        ),
        cost_estimate=cost,
    )(x, w, b)

    if Bp != B or Vp != V:
        out = out[:B, :V]   # only when padding actually occurred
    return out


if __name__ == "__main__":
    # Small but tiling-exercising sizes: batch=16, embedding=32, vocab=512.
    B, E, V = 16, 32, 512
    key = jax.random.PRNGKey(0)
    k_emb, k_w, k_b, k_idx = jax.random.split(key, 4)

    embedding_table = jax.random.normal(k_emb, (V, E), dtype=jnp.float32)
    linear_w = jax.random.normal(k_w, (V, E), dtype=jnp.float32) * 0.1  # nn.Linear (out, in)
    linear_b = jax.random.normal(k_b, (V,), dtype=jnp.float32) * 0.1
    input_word = jax.random.randint(k_idx, (B,), 0, V, dtype=jnp.int32)

    # Small block sizes so the demo actually runs a (2, 4) grid with the online
    # softmax carried across vocab tiles (production defaults: 128 / 2048).
    out = skipgram_forward(input_word, embedding_table, linear_w, linear_b,
                           block_b=8, block_v=128)
    out = jax.block_until_ready(out)
    assert out.shape == (B, V)

    # Reference 1: same bf16-rounded MXU operands, f32 accumulation -> tight match.
    embeds = jnp.take(embedding_table, input_word, axis=0)
    x_r = embeds.astype(jnp.bfloat16).astype(jnp.float32)
    w_r = linear_w.astype(jnp.bfloat16).astype(jnp.float32)
    ref_bf16 = jax.nn.log_softmax(x_r @ w_r.T + linear_b, axis=1)
    assert jnp.allclose(out, ref_bf16, atol=1e-4, rtol=1e-4), \
        float(jnp.max(jnp.abs(out - ref_bf16)))

    # Reference 2: pure-f32 PyTorch-equivalent forward -> loose match (bf16 matmul).
    ref_f32 = jax.nn.log_softmax(embeds @ linear_w.T + linear_b, axis=1)
    assert jnp.allclose(out, ref_f32, atol=5e-2, rtol=5e-2)

    print("KERNEL_OK")
</pallas_src>

<mosaic_0001>
module attributes {stable_mosaic.version = 11 : i64} {
  func.func @_fused_logsoftmax_kernel(%arg0: i32, %arg1: i32, %arg2: memref<8x32xbf16, #tpu.memory_space<vmem>>, %arg3: memref<128x32xbf16, #tpu.memory_space<vmem>>, %arg4: memref<1x128xf32, #tpu.memory_space<vmem>>, %arg5: memref<8x512xf32, #tpu.memory_space<vmem>>, %arg6: memref<8x1xf32, #tpu.memory_space<vmem>>, %arg7: memref<8x1xf32, #tpu.memory_space<vmem>>) attributes {dimension_semantics = [#tpu.dimension_semantics<parallel>, #tpu.dimension_semantics<arbitrary>], iteration_bounds = array<i64: 2, 4>, scalar_prefetch = 0 : i64, scratch_operands = 2 : i64, tpu.core_type = #tpu.core_type<tc>, window_params = [{transform_indices = @transform_0, window_bounds = array<i64: 8, 32>}, {transform_indices = @transform_1, window_bounds = array<i64: 128, 32>}, {transform_indices = @transform_2, window_bounds = array<i64: 1, 128>}, {transform_indices = @transform_3, window_bounds = array<i64: 8, 512>}]} {
    %c0_i32 = arith.constant 0 : i32
    %0 = arith.cmpi eq, %arg1, %c0_i32 : i32
    %1 = arith.extui %0 : i1 to i32
    %c0_i32_0 = arith.constant 0 : i32
    %2 = arith.cmpi ne, %1, %c0_i32_0 : i32
    scf.if %2 {
      %cst_18 = arith.constant 0xFF800000 : f32
      %32 = vector.broadcast %cst_18 : f32 to vector<8x1xf32>
      %c0_19 = arith.constant 0 : index
      %c0_20 = arith.constant 0 : index
      %33 = vector.load %arg6[%c0_19, %c0_20] : memref<8x1xf32, #tpu.memory_space<vmem>>, vector<8x1xf32>
      tpu.vector_store %arg6[%c0_19, %c0_20], %32 {strides = array<i32>} : memref<8x1xf32, #tpu.memory_space<vmem>>, vector<8x1xf32>,
      %cst_21 = arith.constant 0.000000e+00 : f32
      %34 = vector.broadcast %cst_21 : f32 to vector<8x1xf32>
      %c0_22 = arith.constant 0 : index
      %c0_23 = arith.constant 0 : index
      %35 = vector.load %arg7[%c0_22, %c0_23] : memref<8x1xf32, #tpu.memory_space<vmem>>, vector<8x1xf32>
      tpu.vector_store %arg7[%c0_22, %c0_23], %34 {strides = array<i32>} : memref<8x1xf32, #tpu.memory_space<vmem>>, vector<8x1xf32>,
    } else {
    }
    %c0 = arith.constant 0 : index
    %c0_1 = arith.constant 0 : index
    %3 = vector.load %arg2[%c0, %c0_1] : memref<8x32xbf16, #tpu.memory_space<vmem>>, vector<8x32xbf16>
    %c0_2 = arith.constant 0 : index
    %c0_3 = arith.constant 0 : index
    %4 = vector.load %arg3[%c0_2, %c0_3] : memref<128x32xbf16, #tpu.memory_space<vmem>>, vector<128x32xbf16>
    %cst = arith.constant dense<0.000000e+00> : vector<8x128xf32>
    %5 = tpu.matmul %3, %4, %cst {dimension_numbers = #tpu.dot_dimension_numbers<[1], [1], [0], [0], [0, 0, 1, 0], [], []>} : vector<8x32xbf16>, vector<128x32xbf16>, vector<8x128xf32> -> vector<8x128xf32>
    %c0_4 = arith.constant 0 : index
    %c0_5 = arith.constant 0 : index
    %6 = vector.load %arg4[%c0_4, %c0_5] : memref<1x128xf32, #tpu.memory_space<vmem>>, vector<1x128xf32>
    %7 = vector.broadcast %6 : vector<1x128xf32> to vector<8x128xf32>
    %8 = arith.addf %5, %7 : vector<8x128xf32>
    %c128_i32 = arith.constant 128 : i32
    %9 = arith.muli %arg1, %c128_i32 : i32
    %10 = tpu.assume_multiple %9, 128 : i32
    %c0_6 = arith.constant 0 : index
    %11 = arith.index_cast %10 : i32 to index
    %12 = vector.load %arg5[%c0_6, %11] : memref<8x512xf32, #tpu.memory_space<vmem>>, vector<8x128xf32>
    tpu.vector_store %arg5[%c0_6, %11], %8 {strides = array<i32>} : memref<8x512xf32, #tpu.memory_space<vmem>>, vector<8x128xf32>,
    %c0_7 = arith.constant 0 : index
    %c0_8 = arith.constant 0 : index
    %13 = vector.load %arg6[%c0_7, %c0_8] : memref<8x1xf32, #tpu.memory_space<vmem>>, vector<8x1xf32>
    %cst_9 = arith.constant dense<0xFF800000> : vector<8xf32>
    %14 = vector.multi_reduction <maximumf>, %8, %cst_9 [1] : vector<8x128xf32> to vector<8xf32>
    %15 = vector.shape_cast %14 : vector<8xf32> to vector<8x1xf32>
    %16 = arith.maximumf %13, %15 : vector<8x1xf32>
    %c0_10 = arith.constant 0 : index
    %c0_11 = arith.constant 0 : index
    %17 = vector.load %arg7[%c0_10, %c0_11] : memref<8x1xf32, #tpu.memory_space<vmem>>, vector<8x1xf32>
    %18 = arith.subf %13, %16 : vector<8x1xf32>
    %19 = math.exp %18 : vector<8x1xf32>
    %20 = arith.mulf %17, %19 : vector<8x1xf32>
    %21 = vector.broadcast %16 : vector<8x1xf32> to vector<8x128xf32>
    %22 = arith.subf %8, %21 : vector<8x128xf32>
    %23 = math.exp %22 : vector<8x128xf32>
    %cst_12 = arith.constant dense<0.000000e+00> : vector<8xf32>
    %24 = vector.multi_reduction <add>, %23, %cst_12 [1] : vector<8x128xf32> to vector<8xf32>
    %25 = vector.shape_cast %24 : vector<8xf32> to vector<8x1xf32>
    %26 = arith.addf %20, %25 : vector<8x1xf32>
    %c0_13 = arith.constant 0 : index
    %c0_14 = arith.constant 0 : index
    %27 = vector.load %arg7[%c0_13, %c0_14] : memref<8x1xf32, #tpu.memory_space<vmem>>, vector<8x1xf32>
    tpu.vector_store %arg7[%c0_13, %c0_14], %26 {strides = array<i32>} : memref<8x1xf32, #tpu.memory_space<vmem>>, vector<8x1xf32>,
    %c0_15 = arith.constant 0 : index
    %c0_16 = arith.constant 0 : index
    %28 = vector.load %arg6[%c0_15, %c0_16] : memref<8x1xf32, #tpu.memory_space<vmem>>, vector<8x1xf32>
    tpu.vector_store %arg6[%c0_15, %c0_16], %16 {strides = array<i32>} : memref<8x1xf32, #tpu.memory_space<vmem>>, vector<8x1xf32>,
    %c3_i32 = arith.constant 3 : i32
    %29 = arith.cmpi eq, %arg1, %c3_i32 : i32
    %30 = arith.extui %29 : i1 to i32
    %c0_i32_17 = arith.constant 0 : i32
    %31 = arith.cmpi ne, %30, %c0_i32_17 : i32
    scf.if %31 {
      %c0_18 = arith.constant 0 : index
      %c0_19 = arith.constant 0 : index
      %32 = vector.load %arg6[%c0_18, %c0_19] : memref<8x1xf32, #tpu.memory_space<vmem>>, vector<8x1xf32>
      %c0_20 = arith.constant 0 : index
      %c0_21 = arith.constant 0 : index
      %33 = vector.load %arg7[%c0_20, %c0_21] : memref<8x1xf32, #tpu.memory_space<vmem>>, vector<8x1xf32>
      %34 = math.log %33 : vector<8x1xf32>
      %35 = arith.addf %32, %34 : vector<8x1xf32>
      %c0_22 = arith.constant 0 : index
      %c0_23 = arith.constant 0 : index
      %36 = vector.load %arg5[%c0_22, %c0_23] : memref<8x512xf32, #tpu.memory_space<vmem>>, vector<8x512xf32>
      %37 = vector.broadcast %35 : vector<8x1xf32> to vector<8x512xf32>
      %38 = arith.subf %36, %37 : vector<8x512xf32>
      %c0_24 = arith.constant 0 : index
      %c0_25 = arith.constant 0 : index
      %39 = vector.load %arg5[%c0_24, %c0_25] : memref<8x512xf32, #tpu.memory_space<vmem>>, vector<8x512xf32>
      tpu.vector_store %arg5[%c0_24, %c0_25], %38 {strides = array<i32>} : memref<8x512xf32, #tpu.memory_space<vmem>>, vector<8x512xf32>,
    } else {
    }
    return
  }
  func.func @transform_0(%arg0: i32, %arg1: i32) -> (i32, i32) {
    %c0_i32 = arith.constant 0 : i32
    %c0_i32_0 = arith.constant 0 : i32
    return %arg0, %c0_i32 : i32, i32
  }
  func.func @transform_1(%arg0: i32, %arg1: i32) -> (i32, i32) {
    %c0_i32 = arith.constant 0 : i32
    %c0_i32_0 = arith.constant 0 : i32
    return %arg1, %c0_i32 : i32, i32
  }
  func.func @transform_2(%arg0: i32, %arg1: i32) -> (i32, i32) {
    %c0_i32 = arith.constant 0 : i32
    %c0_i32_0 = arith.constant 0 : i32
    return %c0_i32, %arg1 : i32, i32
  }
  func.func @transform_3(%arg0: i32, %arg1: i32) -> (i32, i32) {
    %c0_i32 = arith.constant 0 : i32
    %c0_i32_0 = arith.constant 0 : i32
    return %arg0, %c0_i32 : i32, i32
  }
}

</mosaic_0001>

<llo_original>
// kernel: tpu_custom_call.1
$region0: #{tpu_custom_call.1}
  #allocation0 [shape = 'u32[]', space=smem, size = 0x4, offset = 0x4, fixed_abs, tag = 'smem constant byte address 0x4 - core index']
  #allocation1 [shape = 'u32[72,128]{1,0:T(1,128)}', space=vmem, size = 0x9000, scoped, tag = 'internal scratch']
  #allocation2 [shape = 'f32[8,1]{1,0:T(8,128)}', space=vmem, size = 0x1000, scoped, tag = 'scratch operand']
  #allocation3 [shape = 'f32[8,1]{1,0:T(8,128)}', space=vmem, size = 0x1000, scoped, tag = 'scratch operand']
  %s0 = inlined_call_operand.vmem [shape: bf16[16,32], index: 0, kind: input, shape index: {}]
  %s1 = inlined_call_operand.vmem [shape: bf16[512,32], index: 1, kind: input, shape index: {}]
  %s2 = inlined_call_operand.vmem [shape: f32[1,512], index: 2, kind: input, shape index: {}]
  %s3 = inlined_call_operand.hbm [shape: f32[16,512], index: 3, kind: output, shape index: {}]
  %s4 = sld [smem:[#allocation0]]
  $region53: #{tpu_custom_call.1} parent=0
    _
  %s6 = ssub.s32 1, %s4
  %s7 = scalar_select 0, %s6, %s4
  $region1: #{tpu_custom_call.1} parent=0
    #allocation4 [shape = 'u8[32768]{0}', space=vmem, size = 0x8000, scoped, tag = 'output window, operand 0']
    #allocation5 [shape = 's32[2]{0}', space=sflag, size = 0x8, scoped, tag = 'scoped memory for tpu_custom_call.1']
    %8 = vsyncpa [#allocation5], 0
    %s9 = scalar_lea.sflag [#allocation5], 1
    %10 = vsyncpa %s9, 0
    loop: start=0, step=1, limit=10
    $region2: #{tpu_custom_call.1} parent=1 // loop_pre_header
      _
    $region3: #{tpu_custom_call.1} parent=1 // loop_header
      %s12 = sphi 0, %s16
      %p13 = scmp.ge.s32.totalorder %s12, 10
      %s19 = sphi 0, %s31
      %s20 = sphi 0, %s27
      %s21 = sphi 0, %s19
      %s22 = sphi 0, %s20
      %s23 = sphi 0, %s21
      %s24 = sphi 0, %s22
      %s34 = sphi 0, %s36
      %s37 = sphi 0, %s34
      %s38 = sphi 0, %s37
      %s54 = sphi 0, %s38
      %s60 = sphi 0, %s62
      %s63 = sphi 0, %s60
      %s64 = sphi 0, %s63
      %s80 = sphi 0, %s64
      %s86 = sphi 0, %s88
      %s89 = sphi 0, %s86
      %s90 = sphi 0, %s89
      %s106 = sphi 0, %s90
      %s112 = sphi 0, %s114
      %s115 = sphi 0, %s112
      %s116 = sphi 0, %s115
      %s132 = sphi 0, %s116
    $region4: #{tpu_custom_call.1} parent=1 // loop_header_branch
      %15 = sbr.rel (%p13) target = $region8
    $region5: #{tpu_custom_call.1} parent=1 // loop_body
      %s17 = ssub.s32 %s12, 1
      %s18 = ssub.s32 %s12, 2
      %s25 = sadd.s32 1, %s20
      %p26 = scmp.ge.s32.totalorder %s25, 4
      %s27 = scalar_select %p26, 0, %s25
      %s28 = sadd.s32 1, %s19
      %s29 = scalar_select %p26, %s28, %s19
      %p30 = scmp.ge.s32.totalorder %s29, 2
      %s31 = scalar_select %p30, 0, %s29
      %s32 = ssub.s32 %s19, %s31
      %p33 = scmp.eq.s32.totalorder %s32, 0
      %s35 = sadd.s32 %s34, 1
      %s36 = scalar_select %p33, %s34, %s35
      %p39 = pneg %p33
      %p40 = scmp.eq.s32.totalorder %s12, 7
      %p41 = por %p39, %p40
      %p42 = scmp.ne.s32.totalorder %s34, %s37
      %p43 = scmp.eq.s32.totalorder %s12, 0
      %p44 = por %p42, %p43
      %p45 = scmp.ne.s32.totalorder %s34, %s37
      %p46 = scmp.eq.s32.totalorder %s17, 7
      %p47 = por %p45, %p46
      %p48 = scmp.ne.s32.totalorder %s37, %s38
      %p49 = scmp.eq.s32.totalorder %s17, 0
      %p50 = por %p48, %p49
      %p51 = scmp.ne.s32.totalorder %s37, %s38
      %p52 = scmp.eq.s32.totalorder %s18, 7
      %p53 = por %p51, %p52
      %p55 = scmp.ne.s32.totalorder %s38, %s54
      %p56 = scmp.eq.s32.totalorder %s18, 0
      %p57 = por %p55, %p56
      %s58 = ssub.s32 %s20, %s27
      %p59 = scmp.eq.s32.totalorder %s58, 0
      %s61 = sadd.s32 %s60, 1
      %s62 = scalar_select %p59, %s60, %s61
      %p65 = pneg %p59
      %p66 = scmp.eq.s32.totalorder %s12, 7
      %p67 = por %p65, %p66
      %p68 = scmp.ne.s32.totalorder %s60, %s63
      %p69 = scmp.eq.s32.totalorder %s12, 0
      %p70 = por %p68, %p69
      %p71 = scmp.ne.s32.totalorder %s60, %s63
      %p72 = scmp.eq.s32.totalorder %s17, 7
      %p73 = por %p71, %p72
      %p74 = scmp.ne.s32.totalorder %s63, %s64
      %p75 = scmp.eq.s32.totalorder %s17, 0
      %p76 = por %p74, %p75
      %p77 = scmp.ne.s32.totalorder %s63, %s64
      %p78 = scmp.eq.s32.totalorder %s18, 7
      %p79 = por %p77, %p78
      %p81 = scmp.ne.s32.totalorder %s64, %s80
      %p82 = scmp.eq.s32.totalorder %s18, 0
      %p83 = por %p81, %p82
      %s84 = ssub.s32 %s20, %s27
      %p85 = scmp.eq.s32.totalorder %s84, 0
      %s87 = sadd.s32 %s86, 1
      %s88 = scalar_select %p85, %s86, %s87
      %p91 = pneg %p85
      %p92 = scmp.eq.s32.totalorder %s12, 7
      %p93 = por %p91, %p92
      %p94 = scmp.ne.s32.totalorder %s86, %s89
      %p95 = scmp.eq.s32.totalorder %s12, 0
      %p96 = por %p94, %p95
      %p97 = scmp.ne.s32.totalorder %s86, %s89
      %p98 = scmp.eq.s32.totalorder %s17, 7
      %p99 = por %p97, %p98
      %p100 = scmp.ne.s32.totalorder %s89, %s90
      %p101 = scmp.eq.s32.totalorder %s17, 0
      %p102 = por %p100, %p101
      %p103 = scmp.ne.s32.totalorder %s89, %s90
      %p104 = scmp.eq.s32.totalorder %s18, 7
      %p105 = por %p103, %p104
      %p107 = scmp.ne.s32.totalorder %s90, %s106
      %p108 = scmp.eq.s32.totalorder %s18, 0
      %p109 = por %p107, %p108
      %s110 = ssub.s32 %s19, %s31
      %p111 = scmp.eq.s32.totalorder %s110, 0
      %s113 = sadd.s32 %s112, 1
      %s114 = scalar_select %p111, %s112, %s113
      %p117 = pneg %p111
      %p118 = scmp.eq.s32.totalorder %s12, 7
      %p119 = por %p117, %p118
      %p120 = scmp.ne.s32.totalorder %s112, %s115
      %p121 = scmp.eq.s32.totalorder %s12, 0
      %p122 = por %p120, %p121
      %p123 = scmp.ne.s32.totalorder %s112, %s115
      %p124 = scmp.eq.s32.totalorder %s17, 7
      %p125 = por %p123, %p124
      %p126 = scmp.ne.s32.totalorder %s115, %s116
      %p127 = scmp.eq.s32.totalorder %s17, 0
      %p128 = por %p126, %p127
      %p129 = scmp.ne.s32.totalorder %s115, %s116
      %p130 = scmp.eq.s32.totalorder %s18, 7
      %p131 = por %p129, %p130
      %p133 = scmp.ne.s32.totalorder %s116, %s132
      %p134 = scmp.eq.s32.totalorder %s18, 0
      %p135 = por %p133, %p134
      %p136 = scmp.le.s32.totalorder 1, %s12
      %p137 = scmp.lt.s32.totalorder %s12, 9
      %p138 = pnand %p136, %p137
      %p139 = pneg %p138
      // Predicated region
      $region9: #{tpu_custom_call.1} parent=5 // pred_check
        _
      $region10: #{tpu_custom_call.1} parent=5 // pred_check_branch
        %141 = sbr.rel (%p138) target = $region12
      $region11: #{tpu_custom_call.1} parent=5 // pred_region
        %s142 = ssub.s32 %s12, 1
      $region12: #{tpu_custom_call.1} parent=5 // pred_fallthru
        _
      %p143 = scmp.lt.s32.totalorder %s12, 8
      // Predicated region
      $region13: #{tpu_custom_call.1} parent=5 // pred_check
        %p144 = pneg %p143
      $region14: #{tpu_custom_call.1} parent=5 // pred_check_branch
        %146 = sbr.rel (%p144) target = $region16
      $region15: #{tpu_custom_call.1} parent=5 // pred_region
        // Predicated region
        $region17: #{tpu_custom_call.1} parent=15 // pred_check
          %p147 = pneg %p44
        $region18: #{tpu_custom_call.1} parent=15 // pred_check_branch
          %149 = sbr.rel (%p147) target = $region20
        $region19: #{tpu_custom_call.1} parent=15 // pred_region
          %p150 = scmp.lt.s32.totalorder %s19, 1
          %s151 = scalar_select %p150, %s19, 1
          %s152 = smul.addr %s151, 4
          %s153 = scalar_lea.vmem %s0, %s152
        $region20: #{tpu_custom_call.1} parent=15 // pred_fallthru
          _
        // Predicated region
        $region21: #{tpu_custom_call.1} parent=15 // pred_check
          %p154 = pneg %p70
        $region22: #{tpu_custom_call.1} parent=15 // pred_check_branch
          %156 = sbr.rel (%p154) target = $region24
        $region23: #{tpu_custom_call.1} parent=15 // pred_region
          %s157 = smul.u32 16, %s20
          %p158 = scmp.lt.s32.totalorder %s157, 63
          %s159 = scalar_select %p158, %s157, 63
          %s160 = smul.addr %s159, 4
          %s161 = scalar_lea.vmem %s1, %s160
          %s162 = smul.u32 16, %s20
        $region24: #{tpu_custom_call.1} parent=15 // pred_fallthru
          _
        // Predicated region
        $region25: #{tpu_custom_call.1} parent=15 // pred_check
          %p163 = pneg %p96
        $region26: #{tpu_custom_call.1} parent=15 // pred_check_branch
          %165 = sbr.rel (%p163) target = $region28
        $region27: #{tpu_custom_call.1} parent=15 // pred_region
          %p166 = scmp.lt.s32.totalorder %s20, 3
          %s167 = scalar_select %p166, %s20, 3
          %s168 = scalar_lea.vmem %s2, %s167
        $region28: #{tpu_custom_call.1} parent=15 // pred_fallthru
          _
      $region16: #{tpu_custom_call.1} parent=5 // pred_fallthru
        _
      %p169 = scmp.le.s32.totalorder 1, %s12
      %p170 = scmp.lt.s32.totalorder %s12, 9
      %p171 = pnand %p169, %p170
      %p172 = pneg %p171
      // Predicated region
      $region29: #{tpu_custom_call.1} parent=5 // pred_check
        _
      $region30: #{tpu_custom_call.1} parent=5 // pred_check_branch
        %174 = sbr.rel (%p171) target = $region32
      $region31: #{tpu_custom_call.1} parent=5 // pred_region
        %s175 = ssub.s32 %s12, 1
        %p176 = scmp.lt.s32.totalorder %s21, 1
        %s177 = scalar_select %p176, %s21, 1
        %s178 = smul.addr %s177, 4
        %s179 = scalar_lea.vmem %s0, %s178
        %p180 = pneg %p50
        %p181 = pneg %p47
        %s182 = smul.u32 16, %s22
        %p183 = scmp.lt.s32.totalorder %s182, 63
        %s184 = scalar_select %p183, %s182, 63
        %s185 = smul.addr %s184, 4
        %s186 = scalar_lea.vmem %s1, %s185
        %p187 = pneg %p76
        %p188 = pneg %p73
        %p189 = scmp.lt.s32.totalorder %s22, 3
        %s190 = scalar_select %p189, %s22, 3
        %s191 = scalar_lea.vmem %s2, %s190
        %p192 = pneg %p102
        %p193 = pneg %p99
        %p194 = pneg %p128
        %p195 = pneg %p125
        %s196 = sand.u32 %s115, 1
        %s197 = scalar_lea.sflag [#allocation5], %s196
        %s198 = sand.u32 %s115, 1
        %s199 = smul.addr %s198, 32
        %s200 = scalar_lea.vmem [#allocation4], %s199
        %p201 = scmp.lt.s32.totalorder %s21, 1
        %s202 = scalar_select %p201, %s21, 1
        %s203 = smul.addr %s202, 4
        %s204 = scalar_lea.vmem %s0, %s203
        %s205 = smul.u32 16, %s22
        %p206 = scmp.lt.s32.totalorder %s205, 63
        %s207 = scalar_select %p206, %s205, 63
        %s208 = smul.addr %s207, 4
        %s209 = scalar_lea.vmem %s1, %s208
        %s210 = smul.u32 16, %s22
        %p211 = scmp.lt.s32.totalorder %s22, 3
        %s212 = scalar_select %p211, %s22, 3
        %s213 = scalar_lea.vmem %s2, %s212
        %p214 = scmp.eq.s32.totalorder %s22, 0
        // Predicated region
        $region33: #{tpu_custom_call.1} parent=31 // pred_check
          %p215 = pneg %p214
        $region34: #{tpu_custom_call.1} parent=31 // pred_check_branch
          %217 = sbr.rel (%p215) target = $region36
        $region35: #{tpu_custom_call.1} parent=31 // pred_region
          %vm218 = vcmask 7168
          %219 = vst.msk [vmem:[#allocation2] sm:$0xff] %vm218, -inf
          %220 = vst.msk [vmem:[#allocation3] sm:$0xff] %vm218, 0.0
        $region36: #{tpu_custom_call.1} parent=31 // pred_fallthru
          _
        %v221 = vld [vmem:[%s204] sm:$0xf]
        %v222 = vld [vmem:[%s209] sm:$0xf]
        %v223 = vld [vmem:[%s209 + $0x4] sm:$0xf]
        %v224 = vld [vmem:[%s209 + $0x8] sm:$0xf]
        %v225 = vld [vmem:[%s209 + $0xc] sm:$0xf]
        %v226 = vld [vmem:[%s209 + $0x10] sm:$0xf]
        %v227 = vld [vmem:[%s209 + $0x14] sm:$0xf]
        %v228 = vld [vmem:[%s209 + $0x18] sm:$0xf]
        %v229 = vld [vmem:[%s209 + $0x1c] sm:$0xf]
        %v230 = vld [vmem:[%s209 + $0x20] sm:$0xf]
        %v231 = vld [vmem:[%s209 + $0x24] sm:$0xf]
        %v232 = vld [vmem:[%s209 + $0x28] sm:$0xf]
        %v233 = vld [vmem:[%s209 + $0x2c] sm:$0xf]
        %v234 = vld [vmem:[%s209 + $0x30] sm:$0xf]
        %v235 = vld [vmem:[%s209 + $0x34] sm:$0xf]
        %v236 = vld [vmem:[%s209 + $0x38] sm:$0xf]
        %v237 = vld [vmem:[%s209 + $0x3c] sm:$0xf]
        %v238 = vld [vmem:[%s213] sm:$0x1]
        %v240 = vperm.slane %v238, 0
        %v258 = vunpack.c.l.b16 %v222
        %v259 = vunpack.c.l.b16 %v223
        %v260 = vunpack.c.l.b16 %v224
        %v261 = vunpack.c.l.b16 %v225
        %v262 = vunpack.c.l.b16 %v226
        %v263 = vunpack.c.l.b16 %v227
        %v264 = vunpack.c.l.b16 %v228
        %v265 = vunpack.c.l.b16 %v229
        %v266 = vunpack.c.l.b16 %v230
        %v267 = vunpack.c.l.b16 %v231
        %v268 = vunpack.c.l.b16 %v232
        %v269 = vunpack.c.l.b16 %v233
        %v270 = vunpack.c.l.b16 %v234
        %v271 = vunpack.c.l.b16 %v235
        %v272 = vunpack.c.l.b16 %v236
        %v273 = vunpack.c.l.b16 %v237
        %v274 = vpack.c.b16 %v259, %v258
        %v275 = vpack.c.b16 %v261, %v260
        %v276 = vpack.c.b16 %v263, %v262
        %v277 = vpack.c.b16 %v265, %v264
        %v278 = vpack.c.b16 %v267, %v266
        %v279 = vpack.c.b16 %v269, %v268
        %v280 = vpack.c.b16 %v271, %v270
        %v281 = vpack.c.b16 %v273, %v272
        %vm282 = vcmask 261120
        %v284 = vsel %vm282, %v221, 0
        %v287 = vsel %vm282, %v274, 0
        %v290 = vsel %vm282, %v275, 0
        %v293 = vsel %vm282, %v276, 0
        %v296 = vsel %vm282, %v277, 0
        %v299 = vsel %vm282, %v278, 0
        %v302 = vsel %vm282, %v279, 0
        %v305 = vsel %vm282, %v280, 0
        %v308 = vsel %vm282, %v281, 0
        %310 = vmatpush.bf16.xpose.msra.mxu0 %v308
        %311 = vmatpush.bf16.xpose.msra.mxu0 %v305
        %312 = vmatpush.bf16.xpose.msra.mxu0 %v302
        %313 = vmatpush.bf16.xpose.msra.mxu0 %v299
        %314 = vmatpush.bf16.xpose.msra.mxu0 %v296
        %315 = vmatpush.bf16.xpose.msra.mxu0 %v293
        %316 = vmatpush.bf16.xpose.msra.mxu0 %v290
        %317 = vmatpush.bf16.xpose.msra.mxu0 %v287
        %318 = vmatmul.bf16.gmra.mxu0 %v284
        %v319 = vpop.f32.mrf.mxu0
        %v320 = vadd.f32 %v240, %v319
        %v321 = vpop.f32.mrf.mxu0
        %322 = vdwg.mxu0
        %s323 = smul.u32 %s22, 128
        %s324 = sshra.s32 %s323, 7
        %s325 = sand.u32 %s323, 127
        %s326 = smul.addr %s324, 8
        %s327 = scalar_lea.vmem %s200, %s326 [#allocation4]
        %328 = vst [vmem:[%s327] sm:$0xff] %v320
        %v329 = vld [vmem:[#allocation2] sm:$0xff]
        %330 = vmax.xlane.f32.xlu0 %v320
        %v331 = vpop.xlane.xlu0 %330
        %v332 = vmax.f32 %v329, %v331
        %v333 = vld [vmem:[#allocation3] sm:$0xff]
        %v334 = vsub.f32 %v329, %v332
        %v335 = vmul.f32 %v334, 1.442695
        %v336 = vpow.pop %v335
        %v337 = vmul.f32 %v333, %v336
        %339 = vset.pattern.permute.xlu0 0
        %340 = vperm.xlu0 %339, %v332
        %v341 = vpop.permute.xlu0 %340
        %v343 = vsub.f32 %v320, %v341
        %v344 = vmul.f32 %v343, 1.442695
        %v345 = vpow.pop %v344
        %346 = vadd.xlane.f32.xlu0 %v345
        %v347 = vpop.xlane.xlu0 %346
        %v348 = vadd.f32 %v337, %v347
        %vm349 = vcmask 7168
        %350 = vst.msk [vmem:[#allocation3] sm:$0xff] %vm349, %v348
        %351 = vst.msk [vmem:[#allocation2] sm:$0xff] %vm349, %v332
        %p352 = scmp.eq.s32.totalorder %s22, 3
        // Predicated region
        $region37: #{tpu_custom_call.1} parent=31 // pred_check
          %p353 = pneg %p352
        $region38: #{tpu_custom_call.1} parent=31 // pred_check_branch
          %355 = sbr.rel (%p353) target = $region40
        $region39: #{tpu_custom_call.1} parent=31 // pred_region
          %v356 = vld [vmem:[#allocation2] sm:$0xff]
          %v357 = vld [vmem:[#allocation3] sm:$0xff]
          %v358 = vlog2.pop %v357
          %v359 = vmul.f32 %v358, 0.6931472
          %v360 = vadd.f32 %v356, %v359
          %v361 = vld [vmem:[%s200] sm:$0xff]
          %v362 = vld [vmem:[%s200 + $0x8] sm:$0xff]
          %v363 = vld [vmem:[%s200 + $0x10] sm:$0xff]
          %v364 = vld [vmem:[%s200 + $0x18] sm:$0xff]
          %366 = vset.pattern.permute.xlu0 0
          %367 = vperm.xlu0 %366, %v360
          %v368 = vpop.permute.xlu0 %367
          %v370 = vsub.f32 %v361, %v368
          %v371 = vsub.f32 %v362, %v368
          %v372 = vsub.f32 %v363, %v368
          %v373 = vsub.f32 %v364, %v368
          %374 = vst [vmem:[%s200] sm:$0xff] %v370
          %375 = vst [vmem:[%s200 + $0x8] sm:$0xff] %v371
          %376 = vst [vmem:[%s200 + $0x10] sm:$0xff] %v372
          %377 = vst [vmem:[%s200 + $0x18] sm:$0xff] %v373
        $region40: #{tpu_custom_call.1} parent=31 // pred_fallthru
          _
        %s378 = sand.u32 %s115, 1
        %s379 = scalar_lea.sflag [#allocation5], %s378
        %s380 = sand.u32 %s115, 1
        %s381 = smul.addr %s380, 32
        %s382 = scalar_lea.vmem [#allocation4], %s381
        // Predicated region
        $region41: #{tpu_custom_call.1} parent=31 // pred_check
          %p383 = pneg %p125
        $region42: #{tpu_custom_call.1} parent=31 // pred_check_branch
          %385 = sbr.rel (%p383) target = $region44
        $region43: #{tpu_custom_call.1} parent=31 // pred_region
          %387 = vsyncadd %s379, 0
          %s388 = smul.addr %s21, 4
          %s389 = smul.addr %s388, 8
          %s390 = scalar_lea.hbm %s3, %s389
          %s392 = sshll.u32 %s382, 4
          %s393 = int_to_ptr.vmem [resolvable:$true] %s392
          %s394 = sshll.u32 %s390, 4
          %s395 = int_to_ptr.hbm [resolvable:$true] %s394
          %397 = dma.vmem_to_hbm [thread:$0]  %s393, 512, %s395, %s379
        $region44: #{tpu_custom_call.1} parent=31 // pred_fallthru
          _
      $region32: #{tpu_custom_call.1} parent=5 // pred_fallthru
        _
      %p398 = scmp.le.s32.totalorder 2, %s12
      // Predicated region
      $region45: #{tpu_custom_call.1} parent=5 // pred_check
        %p399 = pneg %p398
      $region46: #{tpu_custom_call.1} parent=5 // pred_check_branch
        %401 = sbr.rel (%p399) target = $region48
      $region47: #{tpu_custom_call.1} parent=5 // pred_region
        %s402 = ssub.s32 %s12, 2
        // Predicated region
        $region49: #{tpu_custom_call.1} parent=47 // pred_check
          %p403 = pneg %p131
        $region50: #{tpu_custom_call.1} parent=47 // pred_check_branch
          %405 = sbr.rel (%p403) target = $region52
        $region51: #{tpu_custom_call.1} parent=47 // pred_region
          %s406 = sand.u32 %s116, 1
          %s407 = scalar_lea.sflag [#allocation5], %s406
          %s408 = sand.u32 %s116, 1
          %s409 = smul.addr %s408, 32
          %s410 = scalar_lea.vmem [#allocation4], %s409
          %412 = dma.done %s407, 512
        $region52: #{tpu_custom_call.1} parent=47 // pred_fallthru
          _
      $region48: #{tpu_custom_call.1} parent=5 // pred_fallthru
        _
    $region6: #{tpu_custom_call.1} parent=1 // loop_footer
      %s16 = sadd.s32 1, %s12
    $region7: #{tpu_custom_call.1} parent=1 // loop_footer_branch
      %11 = sbr.rel target = $region3
    $region8: #{tpu_custom_call.1} parent=1 // loop_exit
      _
    %413 = vsyncpa [#allocation5], 1
    %s414 = scalar_lea.sflag [#allocation5], 1
    %415 = vsyncpa %s414, 1

</llo_original>
